<compile_context>
chip_gen: v7x
topology: tpu7x:2x2x1
jax: 0.10.0
libtpu: 0.0.40
codegen_flags: <defaults>
</compile_context>

<pallas_src>
import jax
import jax.numpy as jnp
from jax import lax
from jax.experimental import pallas as pl
from jax.experimental.pallas import tpu as pltpu


def _round_up(x, m):
    return ((x + m - 1) // m) * m


def _vmem_capacity_bytes():
    # Conservative fallback = v7x per-TC VMEM (works everywhere).
    try:
        return int(pltpu.get_tpu_info().vmem_capacity_bytes)
    except Exception:
        return 64 << 20


# ---------------------------------------------------------------------------
# Kernels
# ---------------------------------------------------------------------------

def _linear_relu_kernel(x_ref, w_ref, o_ref, acc_ref):
    # Multi-K-step path: accumulate into an f32 VMEM scratch; epilogue
    # (relu + cast) only on the final K step.
    @pl.when(pl.program_id(2) == 0)
    def _init():
        acc_ref[...] = jnp.zeros_like(acc_ref)

    # x block: (tm, tk); w block (pre-transposed weight): (tk, tn).
    acc_ref[...] += jnp.dot(
        x_ref[...], w_ref[...], preferred_element_type=jnp.float32
    )

    @pl.when(pl.program_id(2) == pl.num_programs(2) - 1)
    def _finalize():
        o_ref[...] = jnp.maximum(acc_ref[...], 0.0).astype(o_ref.dtype)


def _linear_relu_single_k_kernel(x_ref, w_ref, o_ref):
    # Fast path when all of K fits in one tile: no scratch, no zero-init,
    # no accumulator re-read.
    acc = jnp.dot(x_ref[...], w_ref[...], preferred_element_type=jnp.float32)
    o_ref[...] = jnp.maximum(acc, 0.0).astype(o_ref.dtype)


# ---------------------------------------------------------------------------
# Tile selection
# ---------------------------------------------------------------------------

def _choose_tn_tk(out_features, in_features, vmem_cap):
    if vmem_cap >= (96 << 20):
        # v5e / v6e: 128 MiB VMEM. Big tiles (v6e needs ~675 flop/byte).
        tn_cap, tk_cap = 2048, 1024
    else:
        # v7x: 64 MiB per TensorCore.
        tn_cap, tk_cap = 1024, 1024
    tn = min(tn_cap, _round_up(out_features, 128))
    tk = min(tk_cap, _round_up(in_features, 128))
    return tn, tk


def _choose_tm(batch, tn, tk, itemsize_c, itemsize_o, vmem_cap):
    tm = min(1024, _round_up(batch, 16))  # bf16 packs 16 rows / sublane group

    # Safety net: keep the double-buffered per-step footprint under ~45% of
    # VMEM (with the caps above this never triggers, but protects odd shapes).
    budget = int(0.45 * vmem_cap)

    def footprint(tm_):
        return (2 * (tm_ * tk + tk * tn) * itemsize_c
                + 2 * tm_ * tn * itemsize_o
                + tm_ * tn * 4)

    while footprint(tm) > budget and tm > 16:
        tm = max(16, tm // 2)
    return tm


# ---------------------------------------------------------------------------
# pallas_call wrapper (operates on padded, pre-transposed operands)
# ---------------------------------------------------------------------------

def _call_kernel(xc, wc, out_dtype, tm, tn, tk, vmem_cap):
    m_pad, k_pad = xc.shape
    k_pad_w, n_pad = wc.shape
    assert k_pad == k_pad_w

    grid_m, grid_n, grid_k = m_pad // tm, n_pad // tn, k_pad // tk

    itemsize_c = jnp.dtype(xc.dtype).itemsize
    itemsize_o = jnp.dtype(out_dtype).itemsize

    # Honest HBM traffic: x re-read grid_N times, w re-read grid_M times.
    cost = pl.CostEstimate(
        flops=2 * m_pad * n_pad * k_pad,
        transcendentals=0,
        bytes_accessed=(m_pad * k_pad * grid_n + n_pad * k_pad * grid_m)
        * itemsize_c
        + m_pad * n_pad * itemsize_o,
    )

    footprint = (
        2 * (tm * tk + tk * tn) * itemsize_c
        + 2 * tm * tn * itemsize_o
        + (tm * tn * 4 if grid_k > 1 else 0)
    )
    vmem_limit = int(min(max(2 * footprint, 32 << 20), int(0.75 * vmem_cap)))
    vmem_limit = max(vmem_limit, footprint + (4 << 20))

    out_shape = jax.ShapeDtypeStruct((m_pad, n_pad), out_dtype)

    if grid_k == 1:
        return pl.pallas_call(
            _linear_relu_single_k_kernel,
            out_shape=out_shape,
            grid_spec=pltpu.PrefetchScalarGridSpec(
                num_scalar_prefetch=0,
                grid=(grid_m, grid_n),
                in_specs=[
                    pl.BlockSpec((tm, tk), lambda i, j: (i, 0)),
                    pl.BlockSpec((tk, tn), lambda i, j: (0, j)),
                ],
                out_specs=pl.BlockSpec((tm, tn), lambda i, j: (i, j)),
            ),
            compiler_params=pltpu.CompilerParams(
                dimension_semantics=("parallel", "parallel"),
                vmem_limit_bytes=vmem_limit,
            ),
            cost_estimate=cost,
        )(xc, wc)

    return pl.pallas_call(
        _linear_relu_kernel,
        out_shape=out_shape,
        grid_spec=pltpu.PrefetchScalarGridSpec(
            num_scalar_prefetch=0,
            grid=(grid_m, grid_n, grid_k),
            in_specs=[
                pl.BlockSpec((tm, tk), lambda i, j, k: (i, k)),
                pl.BlockSpec((tk, tn), lambda i, j, k: (k, j)),
            ],
            out_specs=pl.BlockSpec((tm, tn), lambda i, j, k: (i, j)),
            scratch_shapes=[pltpu.VMEM((tm, tn), jnp.float32)],
        ),
        compiler_params=pltpu.CompilerParams(
            dimension_semantics=("parallel", "parallel", "arbitrary"),
            vmem_limit_bytes=vmem_limit,
        ),
        cost_estimate=cost,
    )(xc, wc)


# ---------------------------------------------------------------------------
# Module-like wrapper (weight prepass cached once, like the PyTorch module)
# ---------------------------------------------------------------------------

class LinearizedWithReluPallas:
    """relu(x @ weight.T), bias removed. weight is in PyTorch [out, in] layout.

    NOTE: compute_dtype=bfloat16 trades a little precision for MXU peak; pass
    compute_dtype=jnp.float32 if full f32 matmul accuracy is required.
    """

    def __init__(self, weight, *, compute_dtype=jnp.bfloat16):
        self.out_features, self.in_features = weight.shape
        self.compute_dtype = compute_dtype
        self.vmem_cap = _vmem_capacity_bytes()

        self.tn, self.tk = _choose_tn_tk(
            self.out_features, self.in_features, self.vmem_cap
        )
        self.n_pad = _round_up(self.out_features, self.tn)
        self.k_pad = _round_up(self.in_features, self.tk)

        # One-time cached prepass (out of the hot path): transpose to (K, N)
        # so the kernel uses a plain (1,)x(0,) contraction (no per-tile XLU
        # transpose), cast to the MXU dtype, and zero-pad to the tile grid.
        wt = jnp.transpose(weight).astype(compute_dtype)
        if wt.shape != (self.k_pad, self.n_pad):
            wt = jnp.pad(
                wt,
                (
                    (0, self.k_pad - self.in_features),
                    (0, self.n_pad - self.out_features),
                ),
            )
        self.w_prepared = wt

    def __call__(self, x):
        batch, in_features = x.shape
        assert in_features == self.in_features
        out_dtype = x.dtype

        itemsize_c = jnp.dtype(self.compute_dtype).itemsize
        itemsize_o = jnp.dtype(out_dtype).itemsize

        tn, tk = self.tn, self.tk
        tm = _choose_tm(batch, tn, tk, itemsize_c, itemsize_o, self.vmem_cap)
        m_pad = _round_up(batch, tm)

        # Keep both v7x TensorCores busy: avoid a degenerate (1, 1, K)
        # "parallel" grid by splitting N when it stays 128-aligned.
        if (m_pad // tm) * (self.n_pad // tn) == 1 and tn % 256 == 0:
            tn //= 2

        # Zero-padding is exact: padded rows/cols contribute 0 and relu(0)=0.
        xc = x.astype(self.compute_dtype)
        if xc.shape != (m_pad, self.k_pad):
            xc = jnp.pad(
                xc, ((0, m_pad - batch), (0, self.k_pad - in_features))
            )

        out_padded = _call_kernel(
            xc, self.w_prepared, out_dtype, tm, tn, tk, self.vmem_cap
        )

        if (m_pad, self.n_pad) != (batch, self.out_features):
            return out_padded[:batch, : self.out_features]
        return out_padded


def linearized_with_relu(x, weight, *, compute_dtype=jnp.bfloat16):
    """Functional one-shot wrapper (prefer the class to cache the weight prep)."""
    return LinearizedWithReluPallas(weight, compute_dtype=compute_dtype)(x)


# ---------------------------------------------------------------------------
# Self-test
# ---------------------------------------------------------------------------

def _check(batch, in_features, out_features, key):
    kx, kw = jax.random.split(key)
    x = jax.random.normal(kx, (batch, in_features), dtype=jnp.float32)
    # nn.Linear default init: U(-1/sqrt(in), 1/sqrt(in)).
    bound = 1.0 / jnp.sqrt(jnp.float32(in_features))
    weight = jax.random.uniform(
        kw, (out_features, in_features), minval=-bound, maxval=bound,
        dtype=jnp.float32,
    )

    module = LinearizedWithReluPallas(weight)  # weight prepass cached once
    out = jax.block_until_ready(module(x))
    assert out.shape == (batch, out_features)
    assert out.dtype == x.dtype

    # Reference: same bf16-cast inputs, f32 accumulation (matches kernel math).
    xr = x.astype(jnp.bfloat16).astype(jnp.float32)
    wr = weight.astype(jnp.bfloat16).astype(jnp.float32)
    ref = jnp.maximum(
        jnp.dot(xr, wr.T, precision=lax.Precision.HIGHEST), 0.0
    )
    assert jnp.allclose(out, ref, atol=1e-3, rtol=1e-3)


if __name__ == "__main__":
    key = jax.random.PRNGKey(0)
    k1, k2 = jax.random.split(key)

    # Small shape consistent with the module's forward (x @ W^T, then relu).
    _check(batch=8, in_features=32, out_features=16, key=k1)
    # Ragged shape exercising padding and the multi-tile path.
    _check(batch=64, in_features=640, out_features=384, key=k2)

    print("KERNEL_OK")
</pallas_src>

<mosaic_0001>
module attributes {stable_mosaic.version = 11 : i64} {
  func.func @_linear_relu_single_k_kernel(%arg0: i32, %arg1: i32, %arg2: memref<16x128xbf16, #tpu.memory_space<vmem>>, %arg3: memref<128x128xbf16, #tpu.memory_space<vmem>>, %arg4: memref<16x128xf32, #tpu.memory_space<vmem>>) attributes {dimension_semantics = [#tpu.dimension_semantics<parallel>, #tpu.dimension_semantics<parallel>], iteration_bounds = array<i64: 1, 1>, scalar_prefetch = 0 : i64, scratch_operands = 0 : i64, tpu.core_type = #tpu.core_type<tc>, window_params = [{transform_indices = @transform_0, window_bounds = array<i64: 16, 128>}, {transform_indices = @transform_1, window_bounds = array<i64: 128, 128>}, {transform_indices = @transform_2, window_bounds = array<i64: 16, 128>}]} {
    %c0 = arith.constant 0 : index
    %c0_0 = arith.constant 0 : index
    %0 = vector.load %arg2[%c0, %c0_0] : memref<16x128xbf16, #tpu.memory_space<vmem>>, vector<16x128xbf16>
    %c0_1 = arith.constant 0 : index
    %c0_2 = arith.constant 0 : index
    %1 = vector.load %arg3[%c0_1, %c0_2] : memref<128x128xbf16, #tpu.memory_space<vmem>>, vector<128x128xbf16>
    %cst = arith.constant dense<0.000000e+00> : vector<16x128xf32>
    %2 = tpu.matmul %0, %1, %cst {dimension_numbers = #tpu.dot_dimension_numbers<[1], [0], [0], [1], [0, 0, 1, 1], [], []>} : vector<16x128xbf16>, vector<128x128xbf16>, vector<16x128xf32> -> vector<16x128xf32>
    %cst_3 = arith.constant 0.000000e+00 : f32
    %3 = vector.broadcast %cst_3 : f32 to vector<16x128xf32>
    %4 = arith.maximumf %2, %3 : vector<16x128xf32>
    %c0_4 = arith.constant 0 : index
    %c0_5 = arith.constant 0 : index
    %5 = vector.load %arg4[%c0_4, %c0_5] : memref<16x128xf32, #tpu.memory_space<vmem>>, vector<16x128xf32>
    tpu.vector_store %arg4[%c0_4, %c0_5], %4 {strides = array<i32>} : memref<16x128xf32, #tpu.memory_space<vmem>>, vector<16x128xf32>,
    return
  }
  func.func @transform_0(%arg0: i32, %arg1: i32) -> (i32, i32) {
    %c0_i32 = arith.constant 0 : i32
    %c0_i32_0 = arith.constant 0 : i32
    return %arg0, %c0_i32 : i32, i32
  }
  func.func @transform_1(%arg0: i32, %arg1: i32) -> (i32, i32) {
    %c0_i32 = arith.constant 0 : i32
    %c0_i32_0 = arith.constant 0 : i32
    return %c0_i32, %arg1 : i32, i32
  }
  func.func @transform_2(%arg0: i32, %arg1: i32) -> (i32, i32) {
    %c0_i32 = arith.constant 0 : i32
    return %arg0, %arg1 : i32, i32
  }
}

</mosaic_0001>

<llo_original>
// kernel: tpu_custom_call.1
$region0: #{tpu_custom_call.1}
  #allocation0 [shape = 'u32[]', space=smem, size = 0x4, offset = 0x4, fixed_abs, tag = 'smem constant byte address 0x4 - core index']
  #allocation1 [shape = 'u32[144,128]{1,0:T(1,128)}', space=vmem, size = 0x12000, scoped, tag = 'internal scratch']
  %s0 = inlined_call_operand.hbm [shape: bf16[16,128], index: 0, kind: input, shape index: {}]
  %s1 = inlined_call_operand.hbm [shape: bf16[128,128], index: 1, kind: input, shape index: {}]
  %s2 = inlined_call_operand.hbm [shape: f32[16,128], index: 2, kind: output, shape index: {}]
  %s3 = sld [smem:[#allocation0]]
  $region26: #{tpu_custom_call.1} parent=0
    _
  %s5 = ssub.s32 1, %s3
  %s6 = scalar_select 0, %s5, %s3
  $region1: #{tpu_custom_call.1} parent=0
    #allocation2 [shape = 'u8[4096]{0}', space=vmem, size = 0x1000, scoped, tag = 'input window, operand 0, single buffered']
    #allocation3 [shape = 's32[1]{0}', space=sflag, size = 0x4, scoped, tag = 'scoped memory for tpu_custom_call.1']
    #allocation4 [shape = 's32[1]{0}', space=sflag, size = 0x4, scoped, tag = 'scoped memory for tpu_custom_call.1']
    #allocation5 [shape = 'u8[32768]{0}', space=vmem, size = 0x8000, scoped, tag = 'input window, operand 1, single buffered']
    #allocation6 [shape = 's32[1]{0}', space=sflag, size = 0x4, scoped, tag = 'scoped memory for tpu_custom_call.1']
    #allocation7 [shape = 'u8[8192]{0}', space=vmem, size = 0x2000, scoped, tag = 'output window, operand 0, single buffered']
    %7 = vsyncpa [#allocation3], 0
    %8 = vsyncpa [#allocation6], 0
    %9 = vsyncpa [#allocation4], 0
    // Predicated region
    $region2: #{tpu_custom_call.1} parent=1 // pred_check
      _
    $region3: #{tpu_custom_call.1} parent=1 // pred_check_branch
      %11 = sbr.rel (0) target = $region5
    $region4: #{tpu_custom_call.1} parent=1 // pred_region
      %s13 = ssub.s32 128, 128
      %14 = vsyncadd [#allocation3], %s13
      %s15 = sshll.u32 [#allocation2], 4
      %s16 = int_to_ptr.vmem [resolvable:$true] %s15
      %21 = dma.hbm_to_vmem [thread:$0]  %s0, 128, %s16, [#allocation3], 64, 64, 4
    $region5: #{tpu_custom_call.1} parent=1 // pred_fallthru
      _
    // Predicated region
    $region6: #{tpu_custom_call.1} parent=1 // pred_check
      _
    $region7: #{tpu_custom_call.1} parent=1 // pred_check_branch
      %23 = sbr.rel (0) target = $region9
    $region8: #{tpu_custom_call.1} parent=1 // pred_region
      %s25 = ssub.s32 1024, 1024
      %26 = vsyncadd [#allocation6], %s25
      %s27 = sshll.u32 [#allocation5], 4
      %s28 = int_to_ptr.vmem [resolvable:$true] %s27
      %33 = dma.hbm_to_vmem [thread:$0]  %s1, 1024, %s28, [#allocation6], 64, 64, 4
    $region9: #{tpu_custom_call.1} parent=1 // pred_fallthru
      _
    // Predicated region
    $region10: #{tpu_custom_call.1} parent=1 // pred_check
      _
    $region11: #{tpu_custom_call.1} parent=1 // pred_check_branch
      %35 = sbr.rel (0) target = $region13
    $region12: #{tpu_custom_call.1} parent=1 // pred_region
      %36 = dma.done [#allocation3], 128
    $region13: #{tpu_custom_call.1} parent=1 // pred_fallthru
      _
    // Predicated region
    $region14: #{tpu_custom_call.1} parent=1 // pred_check
      _
    $region15: #{tpu_custom_call.1} parent=1 // pred_check_branch
      %38 = sbr.rel (0) target = $region17
    $region16: #{tpu_custom_call.1} parent=1 // pred_region
      %39 = dma.done [#allocation6], 1024
    $region17: #{tpu_custom_call.1} parent=1 // pred_fallthru
      _
    %v41 = vld [vmem:[#allocation2] sm:$0xf]
    %v42 = vld [vmem:[#allocation2 + $0x4] sm:$0xf]
    %v43 = vld [vmem:[#allocation5] sm:$0xf]
    %v44 = vld [vmem:[#allocation5 + $0x4] sm:$0xf]
    %v45 = vld [vmem:[#allocation5 + $0x8] sm:$0xf]
    %v46 = vld [vmem:[#allocation5 + $0xc] sm:$0xf]
    %v47 = vld [vmem:[#allocation5 + $0x10] sm:$0xf]
    %v48 = vld [vmem:[#allocation5 + $0x14] sm:$0xf]
    %v49 = vld [vmem:[#allocation5 + $0x18] sm:$0xf]
    %v50 = vld [vmem:[#allocation5 + $0x1c] sm:$0xf]
    %v51 = vld [vmem:[#allocation5 + $0x20] sm:$0xf]
    %v52 = vld [vmem:[#allocation5 + $0x24] sm:$0xf]
    %v53 = vld [vmem:[#allocation5 + $0x28] sm:$0xf]
    %v54 = vld [vmem:[#allocation5 + $0x2c] sm:$0xf]
    %v55 = vld [vmem:[#allocation5 + $0x30] sm:$0xf]
    %v56 = vld [vmem:[#allocation5 + $0x34] sm:$0xf]
    %v57 = vld [vmem:[#allocation5 + $0x38] sm:$0xf]
    %v58 = vld [vmem:[#allocation5 + $0x3c] sm:$0xf]
    %v61 = vunpack.c.l.b16 %v41
    %v62 = vunpack.c.l.b16 %v42
    %v63 = vpack.c.b16 %v62, %v61
    %v81 = vunpack.c.l.b16 %v43
    %v82 = vunpack.c.l.b16 %v44
    %v83 = vunpack.c.l.b16 %v45
    %v84 = vunpack.c.l.b16 %v46
    %v85 = vunpack.c.l.b16 %v47
    %v86 = vunpack.c.l.b16 %v48
    %v87 = vunpack.c.l.b16 %v49
    %v88 = vunpack.c.l.b16 %v50
    %v89 = vunpack.c.l.b16 %v51
    %v90 = vunpack.c.l.b16 %v52
    %v91 = vunpack.c.l.b16 %v53
    %v92 = vunpack.c.l.b16 %v54
    %v93 = vunpack.c.l.b16 %v55
    %v94 = vunpack.c.l.b16 %v56
    %v95 = vunpack.c.l.b16 %v57
    %v96 = vunpack.c.l.b16 %v58
    %v97 = vpack.c.b16 %v82, %v81
    %v98 = vpack.c.b16 %v84, %v83
    %v99 = vpack.c.b16 %v86, %v85
    %v100 = vpack.c.b16 %v88, %v87
    %v101 = vpack.c.b16 %v90, %v89
    %v102 = vpack.c.b16 %v92, %v91
    %v103 = vpack.c.b16 %v94, %v93
    %v104 = vpack.c.b16 %v96, %v95
    %113 = vmatprep.subr.bf16.mxu0 0
    %114 = vmatpush1.bf16.msra.mxu0 %v97
    %115 = vmatprep.subr.bf16.mxu0 0
    %116 = vmatpush1.bf16.msra.mxu0 %v98
    %117 = vmatprep.subr.bf16.mxu0 0
    %118 = vmatpush1.bf16.msra.mxu0 %v99
    %119 = vmatprep.subr.bf16.mxu0 0
    %120 = vmatpush1.bf16.msra.mxu0 %v100
    %121 = vmatprep.subr.bf16.mxu0 0
    %122 = vmatpush1.bf16.msra.mxu0 %v101
    %123 = vmatprep.subr.bf16.mxu0 0
    %124 = vmatpush1.bf16.msra.mxu0 %v102
    %125 = vmatprep.subr.bf16.mxu0 0
    %126 = vmatpush1.bf16.msra.mxu0 %v103
    %127 = vmatprep.subr.bf16.mxu0 0
    %128 = vmatpush1.bf16.msra.mxu0 %v104
    %129 = vmatprep.subr.bf16.mxu0 0
    %130 = vmatpush1.bf16.msra.mxu0 0
    %131 = vmatprep.subr.bf16.mxu0 0
    %132 = vmatpush1.bf16.msra.mxu0 0
    %133 = vmatprep.subr.bf16.mxu0 0
    %134 = vmatpush1.bf16.msra.mxu0 0
    %135 = vmatprep.subr.bf16.mxu0 0
    %136 = vmatpush1.bf16.msra.mxu0 0
    %137 = vmatprep.subr.bf16.mxu0 0
    %138 = vmatpush1.bf16.msra.mxu0 0
    %139 = vmatprep.subr.bf16.mxu0 0
    %140 = vmatpush1.bf16.msra.mxu0 0
    %141 = vmatprep.subr.bf16.mxu0 0
    %142 = vmatpush1.bf16.msra.mxu0 0
    %143 = vmatprep.subr.bf16.mxu0 0
    %144 = vmatpush1.bf16.msra.mxu0 0
    %145 = vmatprep.mubr.bf16.mxu0 0
    %146 = vmatmul.mubr.bf16.gmra.mrb[0].mxu0 %v63
    %v147 = vpop.f32.mrb[0].mxu0
    %v148 = vadd.f32 0.0, %v147
    %v149 = vpop.f32.mrb[0].mxu0
    %v150 = vpop.f32.mrb[0].mxu0
    %v151 = vadd.f32 0.0, %v150
    %v152 = vpop.f32.mrb[0].mxu0
    %153 = vdwg.mxu0
    %v154 = vmax.f32 %v148, 0.0
    %v155 = vmax.f32 %v151, 0.0
    %156 = vst [vmem:[#allocation7] sm:$0xff] %v154
    %157 = vst [vmem:[#allocation7 + $0x8] sm:$0xff] %v155
    // Predicated region
    $region18: #{tpu_custom_call.1} parent=1 // pred_check
      _
    $region19: #{tpu_custom_call.1} parent=1 // pred_check_branch
      %159 = sbr.rel (0) target = $region21
    $region20: #{tpu_custom_call.1} parent=1 // pred_region
      %s161 = ssub.s32 256, 256
      %162 = vsyncadd [#allocation4], %s161
      %s163 = sshll.u32 [#allocation7], 4
      %s164 = int_to_ptr.vmem [resolvable:$true] %s163
      %169 = dma.vmem_to_hbm [thread:$0]  %s164, 256, %s2, [#allocation4], 128, 128, 8
    $region21: #{tpu_custom_call.1} parent=1 // pred_fallthru
      _
    // Predicated region
    $region22: #{tpu_custom_call.1} parent=1 // pred_check
      _
    $region23: #{tpu_custom_call.1} parent=1 // pred_check_branch
      %171 = sbr.rel (0) target = $region25
    $region24: #{tpu_custom_call.1} parent=1 // pred_region
      %172 = dma.done [#allocation4], 256
    $region25: #{tpu_custom_call.1} parent=1 // pred_fallthru
      _
    %173 = vsyncpa [#allocation3], 1
    %174 = vsyncpa [#allocation6], 1
    %175 = vsyncpa [#allocation4], 1

</llo_original>
